<compile_context>
chip_gen: v6e
topology: v6e:2x2x1
jax: 0.10.0
libtpu: 0.0.40
codegen_flags: <defaults>
</compile_context>

<pallas_src>
import functools

import jax
import jax.numpy as jnp
from jax.experimental import pallas as pl
from jax.experimental.pallas import tpu as pltpu

_VMEM = pl.BlockSpec(memory_space=pltpu.MemorySpace.VMEM)


def _dot_bf16(a, b):
    """MXU matmul: bf16 operands, f32 accumulation."""
    return jnp.dot(a.astype(jnp.bfloat16), b.astype(jnp.bfloat16),
                   preferred_element_type=jnp.float32)


def _bn_relu(z, gamma, beta, eps=1e-5):
    """BatchNorm1d (training-mode batch stats, biased variance like PyTorch) + ReLU."""
    mu = jnp.mean(z, axis=0, keepdims=True)
    var = jnp.mean(jnp.square(z - mu), axis=0, keepdims=True)
    zn = (z - mu) * jax.lax.rsqrt(var + eps)
    return jnp.maximum(zn * gamma + beta, 0.0)


# -----------------------------------------------------------------------------
# Single fused kernel: mega regressor + 2-layer GraphSAGE + fc head.
# -----------------------------------------------------------------------------
def _fused_kernel(xe_ref, pool_ref,                    # mega inputs
                  wp_ref, bp_ref, wo_ref, bo_ref,      # mega params
                  x_ref, a_ref,                        # sage inputs
                  sw1_ref, sb1_ref, sw2_ref, sb2_ref,  # sage params (row-stacked)
                  fw1m_ref, fw1s_ref, fb1_ref, g1_ref, be1_ref,   # fc layer 1 + BN1
                  fw2_ref, fb2_ref, g2_ref, be2_ref,               # fc layer 2 + BN2
                  fw3_ref, fb3_ref,                                # fc layer 3 (padded)
                  out_ref):
    B = pool_ref.shape[0]

    # ---------------- mega chunk regressor (masked mean pool) ----------------
    # h = relu(flat(inputs_embeds) @ Wp + bp)   [B*S, Hm]  -- single MXU pass
    h = jnp.maximum(_dot_bf16(xe_ref[...], wp_ref[...]) + bp_ref[...], 0.0)
    pool_w = pool_ref[...]                                  # [B, B*S] block-diag mask
    msum = _dot_bf16(pool_w, h)                             # [B, Hm] masked sum (MXU)
    # Clamp the denominator so fully-masked rows do not produce NaN/Inf.
    denom = jnp.maximum(jnp.sum(pool_w, axis=1, keepdims=True), 1.0)   # [B, 1]
    pooled = msum * pl.reciprocal(denom, approx=True)       # divide on the EUP
    mega_out = _dot_bf16(pooled, wo_ref[...]) + bo_ref[...]  # [B, F_mega]

    # ---------------- 2-layer GraphSAGE (mean aggregator) --------------------
    x = x_ref[...]                                          # [N, Fin]
    a = a_ref[...]                                          # [N, N] row-normalized
    agg1 = _dot_bf16(a, x)                                  # mean of neighbours
    xa = jnp.concatenate([x, agg1], axis=-1)                # [N, 2*Fin]
    h1 = jnp.maximum(_dot_bf16(xa, sw1_ref[...]) + sb1_ref[...], 0.0)   # [N, Hc]
    agg2 = _dot_bf16(a, h1)
    ha = jnp.concatenate([h1, agg2], axis=-1)               # [N, 2*Hc]
    sage_out = _dot_bf16(ha, sw2_ref[...]) + sb2_ref[...]   # [N, out_c] (VMEM only)
    sage_rows = sage_out[:B]                                # [B, out_c]

    # ---------------- fc head (concat folded into split weight) --------------
    # cat([mega, sage[:B]]) @ W1 == mega @ W1[:F_mega] + sage[:B] @ W1[F_mega:]
    if sage_rows.shape[1] == 1:
        # out_channels == 1: rank-1 update on the VPU, avoids a K=1 matmul.
        z1_sage = sage_rows * fw1s_ref[...]
    else:
        z1_sage = _dot_bf16(sage_rows, fw1s_ref[...])
    z1 = _dot_bf16(mega_out, fw1m_ref[...]) + z1_sage + fb1_ref[...]
    a1 = _bn_relu(z1, g1_ref[...], be1_ref[...])
    z2 = _dot_bf16(a1, fw2_ref[...]) + fb2_ref[...]
    a2 = _bn_relu(z2, g2_ref[...], be2_ref[...])
    # Final Linear(., 1) padded to 128 output lanes -> full-lane unmasked store.
    out_ref[...] = _dot_bf16(a2, fw3_ref[...]) + fb3_ref[...]   # [B, 128], col 0 real


# -----------------------------------------------------------------------------
# Wrapper
# -----------------------------------------------------------------------------
def _pool_matrix(attention_mask):
    """[B, S] mask -> [B, B*S] block-diagonal pooling matrix (mean-pool as matmul)."""
    B, S = attention_mask.shape
    m = attention_mask.astype(jnp.float32)
    eye = jnp.eye(B, dtype=jnp.float32)
    return (eye[:, :, None] * m[None, :, :]).reshape(B, B * S)


def dense_mean_adjacency(edge_index, num_nodes):
    """edge_index: [2, E] (src, dst). Row-normalized dense adjacency for mean agg."""
    src, dst = edge_index[0], edge_index[1]
    a = jnp.zeros((num_nodes, num_nodes), jnp.float32).at[dst, src].add(1.0)
    deg = jnp.maximum(a.sum(axis=1, keepdims=True), 1.0)
    return a / deg


@functools.partial(jax.jit, static_argnames=("batch_size",))
def mega_graphsage_mlp_forward(params, x, a_norm, inputs_embeds, attention_mask,
                               batch_size):
    B, S, D = inputs_embeds.shape
    assert batch_size == B, "batch_size must match inputs_embeds batch dim"
    xe_flat = inputs_embeds.reshape(B * S, D)      # free relabel (row-major)
    pool_w = _pool_matrix(attention_mask)          # [B, B*S]

    mg, sg, fc = params["mega"], params["sage"], params["fc"]
    out = pl.pallas_call(
        _fused_kernel,
        out_shape=jax.ShapeDtypeStruct((B, 128), jnp.float32),
        in_specs=[_VMEM] * 23,
        out_specs=_VMEM,
        compiler_params=pltpu.CompilerParams(vmem_limit_bytes=32 * 1024 * 1024),
    )(xe_flat, pool_w,
      mg["wp"], mg["bp"], mg["wo"], mg["bo"],
      x, a_norm,
      sg["w1"], sg["b1"], sg["w2"], sg["b2"],
      fc["w1_mega"], fc["w1_sage"], fc["b1"], fc["g1"], fc["be1"],
      fc["w2"], fc["b2"], fc["g2"], fc["be2"],
      fc["w3_pad"], fc["b3_pad"])
    # Column 0 holds the real logit; squeeze() matches torch's remove-all-1-dims.
    return jnp.squeeze(out[:, :1])


# -----------------------------------------------------------------------------
# Parameter init (deterministic, xavier-uniform like the module's init_weights)
# -----------------------------------------------------------------------------
def _xavier(key, fan_in, fan_out):
    limit = jnp.sqrt(6.0 / (fan_in + fan_out))
    return jax.random.uniform(key, (fan_in, fan_out), jnp.float32, -limit, limit)


def make_params(key, *, input_dim, hidden3, f_mega, in_channels,
                hidden_channels, out_channels, num_features, hidden1, hidden2):
    ks = jax.random.split(key, 16)
    mega = {
        "wp": _xavier(ks[0], input_dim, hidden3),
        "bp": jnp.zeros((1, hidden3), jnp.float32),
        "wo": _xavier(ks[1], hidden3, f_mega),
        "bo": jnp.zeros((1, f_mega), jnp.float32),
    }
    # SAGE weights, row-stacked [self ; neighbour] so each layer is one matmul.
    ws1 = _xavier(ks[2], in_channels, hidden_channels)
    wn1 = _xavier(ks[3], in_channels, hidden_channels)
    ws2 = _xavier(ks[4], hidden_channels, out_channels)
    wn2 = _xavier(ks[5], hidden_channels, out_channels)
    sage = {
        "w1": jnp.concatenate([ws1, wn1], axis=0),      # [2*Fin, Hc]
        "b1": jnp.zeros((1, hidden_channels), jnp.float32),
        "w2": jnp.concatenate([ws2, wn2], axis=0),      # [2*Hc, out_c]
        "b2": jnp.zeros((1, out_channels), jnp.float32),
    }
    # fc: split the first Linear's weight rows at f_mega (folds the concat),
    # pad the last Linear to 128 output lanes (full-lane store; col 0 is real).
    w1 = _xavier(ks[6], num_features, hidden1)
    w3 = _xavier(ks[8], hidden2, 1)
    fc = {
        "w1_mega": w1[:f_mega],                          # [f_mega, hidden1]
        "w1_sage": w1[f_mega:],                          # [out_c, hidden1]
        "b1": jnp.zeros((1, hidden1), jnp.float32),
        "g1": jnp.ones((1, hidden1), jnp.float32),
        "be1": jnp.zeros((1, hidden1), jnp.float32),
        "w2": _xavier(ks[7], hidden1, hidden2),
        "b2": jnp.zeros((1, hidden2), jnp.float32),
        "g2": jnp.ones((1, hidden2), jnp.float32),
        "be2": jnp.zeros((1, hidden2), jnp.float32),
        "w3_pad": jnp.zeros((hidden2, 128), jnp.float32).at[:, :1].set(w3),
        "b3_pad": jnp.zeros((1, 128), jnp.float32),
    }
    return {"mega": mega, "sage": sage, "fc": fc}


if __name__ == "__main__":
    # Small shapes consistent with the forward.
    B = 8            # batch_size
    S = 8            # sequence length (chunks)
    input_dim = 3    # per-position embedding dim
    hidden3 = 32     # mega hidden
    in_channels = 16
    hidden_channels = 32
    out_channels = 1                       # SAGE output dim (module default)
    num_features = 64                      # fc input dim
    f_mega = num_features - out_channels   # so concat width == num_features
    hidden1, hidden2 = 128, 64             # small fc hidden sizes
    N, E = 32, 64                          # graph nodes / edges

    key = jax.random.PRNGKey(0)
    k_par, k_x, k_emb, k_edge = jax.random.split(key, 4)

    params = make_params(
        k_par, input_dim=input_dim, hidden3=hidden3, f_mega=f_mega,
        in_channels=in_channels, hidden_channels=hidden_channels,
        out_channels=out_channels, num_features=num_features,
        hidden1=hidden1, hidden2=hidden2)

    x = jax.random.normal(k_x, (N, in_channels), jnp.float32)
    inputs_embeds = jax.random.normal(k_emb, (B, S, input_dim), jnp.float32)
    attention_mask = jnp.ones((B, S), jnp.float32).at[:, S // 2:].set(
        jnp.tile(jnp.array([1.0, 0.0, 1.0, 0.0], jnp.float32), (B, 1)))
    edge_index = jax.random.randint(k_edge, (2, E), 0, N, jnp.int32)
    a_norm = dense_mean_adjacency(edge_index, N)

    logits = mega_graphsage_mlp_forward(params, x, a_norm, inputs_embeds,
                                        attention_mask, batch_size=B)
    jax.block_until_ready(logits)
    assert logits.shape == (B,), logits.shape
    print("KERNEL_OK")
</pallas_src>

<mosaic_0001>
module attributes {stable_mosaic.version = 11 : i64} {
  func.func @_fused_kernel(%arg0: memref<64x3xf32, #tpu.memory_space<vmem>>, %arg1: memref<8x64xf32, #tpu.memory_space<vmem>>, %arg2: memref<3x32xf32, #tpu.memory_space<vmem>>, %arg3: memref<1x32xf32, #tpu.memory_space<vmem>>, %arg4: memref<32x63xf32, #tpu.memory_space<vmem>>, %arg5: memref<1x63xf32, #tpu.memory_space<vmem>>, %arg6: memref<32x16xf32, #tpu.memory_space<vmem>>, %arg7: memref<32x32xf32, #tpu.memory_space<vmem>>, %arg8: memref<32x32xf32, #tpu.memory_space<vmem>>, %arg9: memref<1x32xf32, #tpu.memory_space<vmem>>, %arg10: memref<64x1xf32, #tpu.memory_space<vmem>>, %arg11: memref<1x1xf32, #tpu.memory_space<vmem>>, %arg12: memref<63x128xf32, #tpu.memory_space<vmem>>, %arg13: memref<1x128xf32, #tpu.memory_space<vmem>>, %arg14: memref<1x128xf32, #tpu.memory_space<vmem>>, %arg15: memref<1x128xf32, #tpu.memory_space<vmem>>, %arg16: memref<1x128xf32, #tpu.memory_space<vmem>>, %arg17: memref<128x64xf32, #tpu.memory_space<vmem>>, %arg18: memref<1x64xf32, #tpu.memory_space<vmem>>, %arg19: memref<1x64xf32, #tpu.memory_space<vmem>>, %arg20: memref<1x64xf32, #tpu.memory_space<vmem>>, %arg21: memref<64x128xf32, #tpu.memory_space<vmem>>, %arg22: memref<1x128xf32, #tpu.memory_space<vmem>>, %arg23: memref<8x128xf32, #tpu.memory_space<vmem>>) attributes {dimension_semantics = [], scalar_prefetch = 0 : i64, scratch_operands = 0 : i64, tpu.core_type = #tpu.core_type<tc>} {
    %c0 = arith.constant 0 : index
    %c0_0 = arith.constant 0 : index
    %0 = vector.load %arg0[%c0, %c0_0] : memref<64x3xf32, #tpu.memory_space<vmem>>, vector<64x3xf32>
    %c0_1 = arith.constant 0 : index
    %c0_2 = arith.constant 0 : index
    %1 = vector.load %arg2[%c0_1, %c0_2] : memref<3x32xf32, #tpu.memory_space<vmem>>, vector<3x32xf32>
    %2 = arith.truncf %0 : vector<64x3xf32> to vector<64x3xbf16>
    %3 = arith.truncf %1 : vector<3x32xf32> to vector<3x32xbf16>
    %cst = arith.constant dense<0.000000e+00> : vector<64x32xf32>
    %4 = tpu.matmul %2, %3, %cst {dimension_numbers = #tpu.dot_dimension_numbers<[1], [0], [0], [1], [0, 0, 1, 1], [], []>} : vector<64x3xbf16>, vector<3x32xbf16>, vector<64x32xf32> -> vector<64x32xf32>
    %c0_3 = arith.constant 0 : index
    %c0_4 = arith.constant 0 : index
    %5 = vector.load %arg3[%c0_3, %c0_4] : memref<1x32xf32, #tpu.memory_space<vmem>>, vector<1x32xf32>
    %6 = vector.broadcast %5 : vector<1x32xf32> to vector<64x32xf32>
    %7 = arith.addf %4, %6 : vector<64x32xf32>
    %cst_5 = arith.constant 0.000000e+00 : f32
    %8 = vector.broadcast %cst_5 : f32 to vector<64x32xf32>
    %9 = arith.maximumf %7, %8 : vector<64x32xf32>
    %c0_6 = arith.constant 0 : index
    %c0_7 = arith.constant 0 : index
    %10 = vector.load %arg1[%c0_6, %c0_7] : memref<8x64xf32, #tpu.memory_space<vmem>>, vector<8x64xf32>
    %11 = arith.truncf %10 : vector<8x64xf32> to vector<8x64xbf16>
    %12 = arith.truncf %9 : vector<64x32xf32> to vector<64x32xbf16>
    %cst_8 = arith.constant dense<0.000000e+00> : vector<8x32xf32>
    %13 = tpu.matmul %11, %12, %cst_8 {dimension_numbers = #tpu.dot_dimension_numbers<[1], [0], [0], [1], [0, 0, 1, 1], [], []>} : vector<8x64xbf16>, vector<64x32xbf16>, vector<8x32xf32> -> vector<8x32xf32>
    %cst_9 = arith.constant dense<0.000000e+00> : vector<8xf32>
    %14 = vector.multi_reduction <add>, %10, %cst_9 [1] : vector<8x64xf32> to vector<8xf32>
    %15 = vector.shape_cast %14 : vector<8xf32> to vector<8x1xf32>
    %cst_10 = arith.constant 1.000000e+00 : f32
    %16 = vector.broadcast %cst_10 : f32 to vector<8x1xf32>
    %17 = arith.maximumf %15, %16 : vector<8x1xf32>
    %18 = tpu.reciprocal %17 {approx = true} : vector<8x1xf32> -> vector<8x1xf32>
    %19 = vector.broadcast %18 : vector<8x1xf32> to vector<8x32xf32>
    %20 = arith.mulf %13, %19 : vector<8x32xf32>
    %c0_11 = arith.constant 0 : index
    %c0_12 = arith.constant 0 : index
    %21 = vector.load %arg4[%c0_11, %c0_12] : memref<32x63xf32, #tpu.memory_space<vmem>>, vector<32x63xf32>
    %22 = arith.truncf %20 : vector<8x32xf32> to vector<8x32xbf16>
    %23 = arith.truncf %21 : vector<32x63xf32> to vector<32x63xbf16>
    %cst_13 = arith.constant dense<0.000000e+00> : vector<8x63xf32>
    %24 = tpu.matmul %22, %23, %cst_13 {dimension_numbers = #tpu.dot_dimension_numbers<[1], [0], [0], [1], [0, 0, 1, 1], [], []>} : vector<8x32xbf16>, vector<32x63xbf16>, vector<8x63xf32> -> vector<8x63xf32>
    %c0_14 = arith.constant 0 : index
    %c0_15 = arith.constant 0 : index
    %25 = vector.load %arg5[%c0_14, %c0_15] : memref<1x63xf32, #tpu.memory_space<vmem>>, vector<1x63xf32>
    %26 = vector.broadcast %25 : vector<1x63xf32> to vector<8x63xf32>
    %27 = arith.addf %24, %26 : vector<8x63xf32>
    %c0_16 = arith.constant 0 : index
    %c0_17 = arith.constant 0 : index
    %28 = vector.load %arg6[%c0_16, %c0_17] : memref<32x16xf32, #tpu.memory_space<vmem>>, vector<32x16xf32>
    %c0_18 = arith.constant 0 : index
    %c0_19 = arith.constant 0 : index
    %29 = vector.load %arg7[%c0_18, %c0_19] : memref<32x32xf32, #tpu.memory_space<vmem>>, vector<32x32xf32>
    %30 = arith.truncf %29 : vector<32x32xf32> to vector<32x32xbf16>
    %31 = arith.truncf %28 : vector<32x16xf32> to vector<32x16xbf16>
    %cst_20 = arith.constant dense<0.000000e+00> : vector<32x16xf32>
    %32 = tpu.matmul %30, %31, %cst_20 {dimension_numbers = #tpu.dot_dimension_numbers<[1], [0], [0], [1], [0, 0, 1, 1], [], []>} : vector<32x32xbf16>, vector<32x16xbf16>, vector<32x16xf32> -> vector<32x16xf32>
    %33 = tpu.concatenate %28, %32 in 1 : vector<32x16xf32>, vector<32x16xf32> -> vector<32x32xf32>
    %c0_21 = arith.constant 0 : index
    %c0_22 = arith.constant 0 : index
    %34 = vector.load %arg8[%c0_21, %c0_22] : memref<32x32xf32, #tpu.memory_space<vmem>>, vector<32x32xf32>
    %35 = arith.truncf %33 : vector<32x32xf32> to vector<32x32xbf16>
    %36 = arith.truncf %34 : vector<32x32xf32> to vector<32x32xbf16>
    %cst_23 = arith.constant dense<0.000000e+00> : vector<32x32xf32>
    %37 = tpu.matmul %35, %36, %cst_23 {dimension_numbers = #tpu.dot_dimension_numbers<[1], [0], [0], [1], [0, 0, 1, 1], [], []>} : vector<32x32xbf16>, vector<32x32xbf16>, vector<32x32xf32> -> vector<32x32xf32>
    %c0_24 = arith.constant 0 : index
    %c0_25 = arith.constant 0 : index
    %38 = vector.load %arg9[%c0_24, %c0_25] : memref<1x32xf32, #tpu.memory_space<vmem>>, vector<1x32xf32>
    %39 = vector.broadcast %38 : vector<1x32xf32> to vector<32x32xf32>
    %40 = arith.addf %37, %39 : vector<32x32xf32>
    %cst_26 = arith.constant 0.000000e+00 : f32
    %41 = vector.broadcast %cst_26 : f32 to vector<32x32xf32>
    %42 = arith.maximumf %40, %41 : vector<32x32xf32>
    %43 = arith.truncf %29 : vector<32x32xf32> to vector<32x32xbf16>
    %44 = arith.truncf %42 : vector<32x32xf32> to vector<32x32xbf16>
    %cst_27 = arith.constant dense<0.000000e+00> : vector<32x32xf32>
    %45 = tpu.matmul %43, %44, %cst_27 {dimension_numbers = #tpu.dot_dimension_numbers<[1], [0], [0], [1], [0, 0, 1, 1], [], []>} : vector<32x32xbf16>, vector<32x32xbf16>, vector<32x32xf32> -> vector<32x32xf32>
    %46 = tpu.concatenate %42, %45 in 1 : vector<32x32xf32>, vector<32x32xf32> -> vector<32x64xf32>
    %c0_28 = arith.constant 0 : index
    %c0_29 = arith.constant 0 : index
    %47 = vector.load %arg10[%c0_28, %c0_29] : memref<64x1xf32, #tpu.memory_space<vmem>>, vector<64x1xf32>
    %48 = arith.truncf %46 : vector<32x64xf32> to vector<32x64xbf16>
    %49 = arith.truncf %47 : vector<64x1xf32> to vector<64x1xbf16>
    %cst_30 = arith.constant dense<0.000000e+00> : vector<32x1xf32>
    %50 = tpu.matmul %48, %49, %cst_30 {dimension_numbers = #tpu.dot_dimension_numbers<[1], [0], [0], [1], [0, 0, 1, 1], [], []>} : vector<32x64xbf16>, vector<64x1xbf16>, vector<32x1xf32> -> vector<32x1xf32>
    %c0_31 = arith.constant 0 : index
    %c0_32 = arith.constant 0 : index
    %51 = vector.load %arg11[%c0_31, %c0_32] : memref<1x1xf32, #tpu.memory_space<vmem>>, vector<1x1xf32>
    %52 = vector.broadcast %51 : vector<1x1xf32> to vector<32x1xf32>
    %53 = arith.addf %50, %52 : vector<32x1xf32>
    %54 = vector.extract_strided_slice %53 {offsets = [0, 0], sizes = [8, 1], strides = [1, 1]} : vector<32x1xf32> to vector<8x1xf32>
    %c0_33 = arith.constant 0 : index
    %c0_34 = arith.constant 0 : index
    %55 = vector.load %arg13[%c0_33, %c0_34] : memref<1x128xf32, #tpu.memory_space<vmem>>, vector<1x128xf32>
    %56 = vector.broadcast %54 : vector<8x1xf32> to vector<8x128xf32>
    %57 = vector.broadcast %55 : vector<1x128xf32> to vector<8x128xf32>
    %58 = arith.mulf %56, %57 : vector<8x128xf32>
    %c0_35 = arith.constant 0 : index
    %c0_36 = arith.constant 0 : index
    %59 = vector.load %arg12[%c0_35, %c0_36] : memref<63x128xf32, #tpu.memory_space<vmem>>, vector<63x128xf32>
    %60 = arith.truncf %27 : vector<8x63xf32> to vector<8x63xbf16>
    %61 = arith.truncf %59 : vector<63x128xf32> to vector<63x128xbf16>
    %cst_37 = arith.constant dense<0.000000e+00> : vector<8x128xf32>
    %62 = tpu.matmul %60, %61, %cst_37 {dimension_numbers = #tpu.dot_dimension_numbers<[1], [0], [0], [1], [0, 0, 1, 1], [], []>} : vector<8x63xbf16>, vector<63x128xbf16>, vector<8x128xf32> -> vector<8x128xf32>
    %63 = arith.addf %62, %58 : vector<8x128xf32>
    %c0_38 = arith.constant 0 : index
    %c0_39 = arith.constant 0 : index
    %64 = vector.load %arg14[%c0_38, %c0_39] : memref<1x128xf32, #tpu.memory_space<vmem>>, vector<1x128xf32>
    %65 = vector.broadcast %64 : vector<1x128xf32> to vector<8x128xf32>
    %66 = arith.addf %63, %65 : vector<8x128xf32>
    %c0_40 = arith.constant 0 : index
    %c0_41 = arith.constant 0 : index
    %67 = vector.load %arg15[%c0_40, %c0_41] : memref<1x128xf32, #tpu.memory_space<vmem>>, vector<1x128xf32>
    %c0_42 = arith.constant 0 : index
    %c0_43 = arith.constant 0 : index
    %68 = vector.load %arg16[%c0_42, %c0_43] : memref<1x128xf32, #tpu.memory_space<vmem>>, vector<1x128xf32>
    %cst_44 = arith.constant dense<0.000000e+00> : vector<128xf32>
    %69 = vector.multi_reduction <add>, %66, %cst_44 [0] : vector<8x128xf32> to vector<128xf32>
    %70 = vector.shape_cast %69 : vector<128xf32> to vector<1x128xf32>
    %cst_45 = arith.constant 8.000000e+00 : f32
    %71 = vector.broadcast %cst_45 : f32 to vector<1x128xf32>
    %72 = arith.divf %70, %71 : vector<1x128xf32>
    %73 = vector.broadcast %72 : vector<1x128xf32> to vector<8x128xf32>
    %74 = arith.subf %66, %73 : vector<8x128xf32>
    %75 = arith.mulf %74, %74 : vector<8x128xf32>
    %cst_46 = arith.constant dense<0.000000e+00> : vector<128xf32>
    %76 = vector.multi_reduction <add>, %75, %cst_46 [0] : vector<8x128xf32> to vector<128xf32>
    %77 = vector.shape_cast %76 : vector<128xf32> to vector<1x128xf32>
    %cst_47 = arith.constant 8.000000e+00 : f32
    %78 = vector.broadcast %cst_47 : f32 to vector<1x128xf32>
    %79 = arith.divf %77, %78 : vector<1x128xf32>
    %80 = vector.broadcast %72 : vector<1x128xf32> to vector<8x128xf32>
    %81 = arith.subf %66, %80 : vector<8x128xf32>
    %cst_48 = arith.constant 9.99999974E-6 : f32
    %82 = vector.broadcast %cst_48 : f32 to vector<1x128xf32>
    %83 = arith.addf %79, %82 : vector<1x128xf32>
    %84 = math.rsqrt %83 : vector<1x128xf32>
    %85 = vector.broadcast %84 : vector<1x128xf32> to vector<8x128xf32>
    %86 = arith.mulf %81, %85 : vector<8x128xf32>
    %87 = vector.broadcast %67 : vector<1x128xf32> to vector<8x128xf32>
    %88 = arith.mulf %86, %87 : vector<8x128xf32>
    %89 = vector.broadcast %68 : vector<1x128xf32> to vector<8x128xf32>
    %90 = arith.addf %88, %89 : vector<8x128xf32>
    %cst_49 = arith.constant 0.000000e+00 : f32
    %91 = vector.broadcast %cst_49 : f32 to vector<8x128xf32>
    %92 = arith.maximumf %90, %91 : vector<8x128xf32>
    %c0_50 = arith.constant 0 : index
    %c0_51 = arith.constant 0 : index
    %93 = vector.load %arg17[%c0_50, %c0_51] : memref<128x64xf32, #tpu.memory_space<vmem>>, vector<128x64xf32>
    %94 = arith.truncf %92 : vector<8x128xf32> to vector<8x128xbf16>
    %95 = arith.truncf %93 : vector<128x64xf32> to vector<128x64xbf16>
    %cst_52 = arith.constant dense<0.000000e+00> : vector<8x64xf32>
    %96 = tpu.matmul %94, %95, %cst_52 {dimension_numbers = #tpu.dot_dimension_numbers<[1], [0], [0], [1], [0, 0, 1, 1], [], []>} : vector<8x128xbf16>, vector<128x64xbf16>, vector<8x64xf32> -> vector<8x64xf32>
    %c0_53 = arith.constant 0 : index
    %c0_54 = arith.constant 0 : index
    %97 = vector.load %arg18[%c0_53, %c0_54] : memref<1x64xf32, #tpu.memory_space<vmem>>, vector<1x64xf32>
    %98 = vector.broadcast %97 : vector<1x64xf32> to vector<8x64xf32>
    %99 = arith.addf %96, %98 : vector<8x64xf32>
    %c0_55 = arith.constant 0 : index
    %c0_56 = arith.constant 0 : index
    %100 = vector.load %arg19[%c0_55, %c0_56] : memref<1x64xf32, #tpu.memory_space<vmem>>, vector<1x64xf32>
    %c0_57 = arith.constant 0 : index
    %c0_58 = arith.constant 0 : index
    %101 = vector.load %arg20[%c0_57, %c0_58] : memref<1x64xf32, #tpu.memory_space<vmem>>, vector<1x64xf32>
    %cst_59 = arith.constant dense<0.000000e+00> : vector<64xf32>
    %102 = vector.multi_reduction <add>, %99, %cst_59 [0] : vector<8x64xf32> to vector<64xf32>
    %103 = vector.shape_cast %102 : vector<64xf32> to vector<1x64xf32>
    %cst_60 = arith.constant 8.000000e+00 : f32
    %104 = vector.broadcast %cst_60 : f32 to vector<1x64xf32>
    %105 = arith.divf %103, %104 : vector<1x64xf32>
    %106 = vector.broadcast %105 : vector<1x64xf32> to vector<8x64xf32>
    %107 = arith.subf %99, %106 : vector<8x64xf32>
    %108 = arith.mulf %107, %107 : vector<8x64xf32>
    %cst_61 = arith.constant dense<0.000000e+00> : vector<64xf32>
    %109 = vector.multi_reduction <add>, %108, %cst_61 [0] : vector<8x64xf32> to vector<64xf32>
    %110 = vector.shape_cast %109 : vector<64xf32> to vector<1x64xf32>
    %cst_62 = arith.constant 8.000000e+00 : f32
    %111 = vector.broadcast %cst_62 : f32 to vector<1x64xf32>
    %112 = arith.divf %110, %111 : vector<1x64xf32>
    %113 = vector.broadcast %105 : vector<1x64xf32> to vector<8x64xf32>
    %114 = arith.subf %99, %113 : vector<8x64xf32>
    %cst_63 = arith.constant 9.99999974E-6 : f32
    %115 = vector.broadcast %cst_63 : f32 to vector<1x64xf32>
    %116 = arith.addf %112, %115 : vector<1x64xf32>
    %117 = math.rsqrt %116 : vector<1x64xf32>
    %118 = vector.broadcast %117 : vector<1x64xf32> to vector<8x64xf32>
    %119 = arith.mulf %114, %118 : vector<8x64xf32>
    %120 = vector.broadcast %100 : vector<1x64xf32> to vector<8x64xf32>
    %121 = arith.mulf %119, %120 : vector<8x64xf32>
    %122 = vector.broadcast %101 : vector<1x64xf32> to vector<8x64xf32>
    %123 = arith.addf %121, %122 : vector<8x64xf32>
    %cst_64 = arith.constant 0.000000e+00 : f32
    %124 = vector.broadcast %cst_64 : f32 to vector<8x64xf32>
    %125 = arith.maximumf %123, %124 : vector<8x64xf32>
    %c0_65 = arith.constant 0 : index
    %c0_66 = arith.constant 0 : index
    %126 = vector.load %arg21[%c0_65, %c0_66] : memref<64x128xf32, #tpu.memory_space<vmem>>, vector<64x128xf32>
    %127 = arith.truncf %125 : vector<8x64xf32> to vector<8x64xbf16>
    %128 = arith.truncf %126 : vector<64x128xf32> to vector<64x128xbf16>
    %cst_67 = arith.constant dense<0.000000e+00> : vector<8x128xf32>
    %129 = tpu.matmul %127, %128, %cst_67 {dimension_numbers = #tpu.dot_dimension_numbers<[1], [0], [0], [1], [0, 0, 1, 1], [], []>} : vector<8x64xbf16>, vector<64x128xbf16>, vector<8x128xf32> -> vector<8x128xf32>
    %c0_68 = arith.constant 0 : index
    %c0_69 = arith.constant 0 : index
    %130 = vector.load %arg22[%c0_68, %c0_69] : memref<1x128xf32, #tpu.memory_space<vmem>>, vector<1x128xf32>
    %131 = vector.broadcast %130 : vector<1x128xf32> to vector<8x128xf32>
    %132 = arith.addf %129, %131 : vector<8x128xf32>
    %c0_70 = arith.constant 0 : index
    %c0_71 = arith.constant 0 : index
    %133 = vector.load %arg23[%c0_70, %c0_71] : memref<8x128xf32, #tpu.memory_space<vmem>>, vector<8x128xf32>
    tpu.vector_store %arg23[%c0_70, %c0_71], %132 {strides = array<i32>} : memref<8x128xf32, #tpu.memory_space<vmem>>, vector<8x128xf32>,
    return
  }
}

</mosaic_0001>

<llo_original>
// kernel: mega_graphsage_mlp_forward.1
$region0: #{mega_graphsage_mlp_forward.1}
  #allocation0 [shape = 'u32[]', space=smem, size = 0x4, offset = 0x4, fixed_abs, tag = 'smem constant byte address 0x4 - core index']
  #allocation1 [shape = 'u32[144,128]{1,0:T(1,128)}', space=vmem, size = 0x12000, scoped, tag = 'internal scratch']
  #allocation2 [shape = 'f32[1,1]{1,0:T(1,128)S(1)}', space=vmem, size = 0x200, scoped, tag = 'scoped memory for mega_graphsage_mlp_forward.1']
  %s0 = inlined_call_operand.vmem [shape: f32[64,3], index: 0, kind: input, shape index: {}]
  %s1 = inlined_call_operand.vmem [shape: f32[8,64], index: 1, kind: input, shape index: {}]
  %s2 = inlined_call_operand.vmem [shape: f32[3,32], index: 2, kind: input, shape index: {}]
  %s3 = inlined_call_operand.vmem [shape: f32[1,32], index: 3, kind: input, shape index: {}]
  %s4 = inlined_call_operand.vmem [shape: f32[32,63], index: 4, kind: input, shape index: {}]
  %s5 = inlined_call_operand.vmem [shape: f32[1,63], index: 5, kind: input, shape index: {}]
  %s6 = inlined_call_operand.vmem [shape: f32[32,16], index: 6, kind: input, shape index: {}]
  %s7 = inlined_call_operand.vmem [shape: f32[32,32], index: 7, kind: input, shape index: {}]
  %s8 = inlined_call_operand.vmem [shape: f32[32,32], index: 8, kind: input, shape index: {}]
  %s9 = inlined_call_operand.vmem [shape: f32[1,32], index: 9, kind: input, shape index: {}]
  %s10 = inlined_call_operand.vmem [shape: f32[64,1], index: 10, kind: input, shape index: {}]
  %s11 = inlined_call_operand.<no memory space> [shape: f32[1,1], index: 11, kind: input, shape index: {}]
  %s12 = inlined_call_operand.vmem [shape: f32[63,128], index: 12, kind: input, shape index: {}]
  %s13 = inlined_call_operand.vmem [shape: f32[1,128], index: 13, kind: input, shape index: {}]
  %s14 = inlined_call_operand.vmem [shape: f32[1,128], index: 14, kind: input, shape index: {}]
  %s15 = inlined_call_operand.vmem [shape: f32[1,128], index: 15, kind: input, shape index: {}]
  %s16 = inlined_call_operand.vmem [shape: f32[1,128], index: 16, kind: input, shape index: {}]
  %s17 = inlined_call_operand.vmem [shape: f32[128,64], index: 17, kind: input, shape index: {}]
  %s18 = inlined_call_operand.vmem [shape: f32[1,64], index: 18, kind: input, shape index: {}]
  %s19 = inlined_call_operand.vmem [shape: f32[1,64], index: 19, kind: input, shape index: {}]
  %s20 = inlined_call_operand.vmem [shape: f32[1,64], index: 20, kind: input, shape index: {}]
  %s21 = inlined_call_operand.vmem [shape: f32[64,128], index: 21, kind: input, shape index: {}]
  %s22 = inlined_call_operand.vmem [shape: f32[1,128], index: 22, kind: input, shape index: {}]
  %s23 = inlined_call_operand.vmem [shape: f32[8,128], index: 23, kind: output, shape index: {}]
  %s24 = sld [smem:[#allocation0]]
  $region102: #{mega_graphsage_mlp_forward.1} parent=0
    _
  %s26 = ssub.s32 1, %s24
  %s27 = scalar_select 0, %s26, %s24
  %v28 = vstv %s11
  %29 = vst [vmem:[#allocation2] sm:$0x1] %v28
  // Predicated region
  $region2: #{mega_graphsage_mlp_forward.1} parent=0 // pred_check
    _
  $region3: #{mega_graphsage_mlp_forward.1} parent=0 // pred_check_branch
    %31 = sbr.rel (0) target = $region5
  $region4: #{mega_graphsage_mlp_forward.1} parent=0 // pred_region
    _
  $region5: #{mega_graphsage_mlp_forward.1} parent=0 // pred_fallthru
    _
  // Predicated region
  $region6: #{mega_graphsage_mlp_forward.1} parent=0 // pred_check
    _
  $region7: #{mega_graphsage_mlp_forward.1} parent=0 // pred_check_branch
    %33 = sbr.rel (0) target = $region9
  $region8: #{mega_graphsage_mlp_forward.1} parent=0 // pred_region
    _
  $region9: #{mega_graphsage_mlp_forward.1} parent=0 // pred_fallthru
    _
  // Predicated region
  $region10: #{mega_graphsage_mlp_forward.1} parent=0 // pred_check
    _
  $region11: #{mega_graphsage_mlp_forward.1} parent=0 // pred_check_branch
    %35 = sbr.rel (0) target = $region13
  $region12: #{mega_graphsage_mlp_forward.1} parent=0 // pred_region
    _
  $region13: #{mega_graphsage_mlp_forward.1} parent=0 // pred_fallthru
    _
  // Predicated region
  $region14: #{mega_graphsage_mlp_forward.1} parent=0 // pred_check
    _
  $region15: #{mega_graphsage_mlp_forward.1} parent=0 // pred_check_branch
    %37 = sbr.rel (0) target = $region17
  $region16: #{mega_graphsage_mlp_forward.1} parent=0 // pred_region
    _
  $region17: #{mega_graphsage_mlp_forward.1} parent=0 // pred_fallthru
    _
  // Predicated region
  $region18: #{mega_graphsage_mlp_forward.1} parent=0 // pred_check
    _
  $region19: #{mega_graphsage_mlp_forward.1} parent=0 // pred_check_branch
    %39 = sbr.rel (0) target = $region21
  $region20: #{mega_graphsage_mlp_forward.1} parent=0 // pred_region
    _
  $region21: #{mega_graphsage_mlp_forward.1} parent=0 // pred_fallthru
    _
  // Predicated region
  $region22: #{mega_graphsage_mlp_forward.1} parent=0 // pred_check
    _
  $region23: #{mega_graphsage_mlp_forward.1} parent=0 // pred_check_branch
    %41 = sbr.rel (0) target = $region25
  $region24: #{mega_graphsage_mlp_forward.1} parent=0 // pred_region
    _
  $region25: #{mega_graphsage_mlp_forward.1} parent=0 // pred_fallthru
    _
  // Predicated region
  $region26: #{mega_graphsage_mlp_forward.1} parent=0 // pred_check
    _
  $region27: #{mega_graphsage_mlp_forward.1} parent=0 // pred_check_branch
    %43 = sbr.rel (0) target = $region29
  $region28: #{mega_graphsage_mlp_forward.1} parent=0 // pred_region
    _
  $region29: #{mega_graphsage_mlp_forward.1} parent=0 // pred_fallthru
    _
  // Predicated region
  $region30: #{mega_graphsage_mlp_forward.1} parent=0 // pred_check
    _
  $region31: #{mega_graphsage_mlp_forward.1} parent=0 // pred_check_branch
    %45 = sbr.rel (0) target = $region33
  $region32: #{mega_graphsage_mlp_forward.1} parent=0 // pred_region
    _
  $region33: #{mega_graphsage_mlp_forward.1} parent=0 // pred_fallthru
    _
  // Predicated region
  $region34: #{mega_graphsage_mlp_forward.1} parent=0 // pred_check
    _
  $region35: #{mega_graphsage_mlp_forward.1} parent=0 // pred_check_branch
    %47 = sbr.rel (0) target = $region37
  $region36: #{mega_graphsage_mlp_forward.1} parent=0 // pred_region
    _
  $region37: #{mega_graphsage_mlp_forward.1} parent=0 // pred_fallthru
    _
  // Predicated region
  $region38: #{mega_graphsage_mlp_forward.1} parent=0 // pred_check
    _
  $region39: #{mega_graphsage_mlp_forward.1} parent=0 // pred_check_branch
    %49 = sbr.rel (0) target = $region41
  $region40: #{mega_graphsage_mlp_forward.1} parent=0 // pred_region
    _
  $region41: #{mega_graphsage_mlp_forward.1} parent=0 // pred_fallthru
    _
  // Predicated region
  $region42: #{mega_graphsage_mlp_forward.1} parent=0 // pred_check
    _
  $region43: #{mega_graphsage_mlp_forward.1} parent=0 // pred_check_branch
    %51 = sbr.rel (0) target = $region45
  $region44: #{mega_graphsage_mlp_forward.1} parent=0 // pred_region
    _
  $region45: #{mega_graphsage_mlp_forward.1} parent=0 // pred_fallthru
    _
  // Predicated region
  $region46: #{mega_graphsage_mlp_forward.1} parent=0 // pred_check
    _
  $region47: #{mega_graphsage_mlp_forward.1} parent=0 // pred_check_branch
    %53 = sbr.rel (0) target = $region49
  $region48: #{mega_graphsage_mlp_forward.1} parent=0 // pred_region
    _
  $region49: #{mega_graphsage_mlp_forward.1} parent=0 // pred_fallthru
    _
  // Predicated region
  $region50: #{mega_graphsage_mlp_forward.1} parent=0 // pred_check
    _
  $region51: #{mega_graphsage_mlp_forward.1} parent=0 // pred_check_branch
    %55 = sbr.rel (0) target = $region53
  $region52: #{mega_graphsage_mlp_forward.1} parent=0 // pred_region
    _
  $region53: #{mega_graphsage_mlp_forward.1} parent=0 // pred_fallthru
    _
  // Predicated region
  $region54: #{mega_graphsage_mlp_forward.1} parent=0 // pred_check
    _
  $region55: #{mega_graphsage_mlp_forward.1} parent=0 // pred_check_branch
    %57 = sbr.rel (0) target = $region57
  $region56: #{mega_graphsage_mlp_forward.1} parent=0 // pred_region
    _
  $region57: #{mega_graphsage_mlp_forward.1} parent=0 // pred_fallthru
    _
  // Predicated region
  $region58: #{mega_graphsage_mlp_forward.1} parent=0 // pred_check
    _
  $region59: #{mega_graphsage_mlp_forward.1} parent=0 // pred_check_branch
    %59 = sbr.rel (0) target = $region61
  $region60: #{mega_graphsage_mlp_forward.1} parent=0 // pred_region
    _
  $region61: #{mega_graphsage_mlp_forward.1} parent=0 // pred_fallthru
    _
  // Predicated region
  $region62: #{mega_graphsage_mlp_forward.1} parent=0 // pred_check
    _
  $region63: #{mega_graphsage_mlp_forward.1} parent=0 // pred_check_branch
    %61 = sbr.rel (0) target = $region65
  $region64: #{mega_graphsage_mlp_forward.1} parent=0 // pred_region
    _
  $region65: #{mega_graphsage_mlp_forward.1} parent=0 // pred_fallthru
    _
  // Predicated region
  $region66: #{mega_graphsage_mlp_forward.1} parent=0 // pred_check
    _
  $region67: #{mega_graphsage_mlp_forward.1} parent=0 // pred_check_branch
    %63 = sbr.rel (0) target = $region69
  $region68: #{mega_graphsage_mlp_forward.1} parent=0 // pred_region
    _
  $region69: #{mega_graphsage_mlp_forward.1} parent=0 // pred_fallthru
    _
  // Predicated region
  $region70: #{mega_graphsage_mlp_forward.1} parent=0 // pred_check
    _
  $region71: #{mega_graphsage_mlp_forward.1} parent=0 // pred_check_branch
    %65 = sbr.rel (0) target = $region73
  $region72: #{mega_graphsage_mlp_forward.1} parent=0 // pred_region
    _
  $region73: #{mega_graphsage_mlp_forward.1} parent=0 // pred_fallthru
    _
  // Predicated region
  $region74: #{mega_graphsage_mlp_forward.1} parent=0 // pred_check
    _
  $region75: #{mega_graphsage_mlp_forward.1} parent=0 // pred_check_branch
    %67 = sbr.rel (0) target = $region77
  $region76: #{mega_graphsage_mlp_forward.1} parent=0 // pred_region
    _
  $region77: #{mega_graphsage_mlp_forward.1} parent=0 // pred_fallthru
    _
  // Predicated region
  $region78: #{mega_graphsage_mlp_forward.1} parent=0 // pred_check
    _
  $region79: #{mega_graphsage_mlp_forward.1} parent=0 // pred_check_branch
    %69 = sbr.rel (0) target = $region81
  $region80: #{mega_graphsage_mlp_forward.1} parent=0 // pred_region
    _
  $region81: #{mega_graphsage_mlp_forward.1} parent=0 // pred_fallthru
    _
  // Predicated region
  $region82: #{mega_graphsage_mlp_forward.1} parent=0 // pred_check
    _
  $region83: #{mega_graphsage_mlp_forward.1} parent=0 // pred_check_branch
    %71 = sbr.rel (0) target = $region85
  $region84: #{mega_graphsage_mlp_forward.1} parent=0 // pred_region
    _
  $region85: #{mega_graphsage_mlp_forward.1} parent=0 // pred_fallthru
    _
  // Predicated region
  $region86: #{mega_graphsage_mlp_forward.1} parent=0 // pred_check
    _
  $region87: #{mega_graphsage_mlp_forward.1} parent=0 // pred_check_branch
    %73 = sbr.rel (0) target = $region89
  $region88: #{mega_graphsage_mlp_forward.1} parent=0 // pred_region
    _
  $region89: #{mega_graphsage_mlp_forward.1} parent=0 // pred_fallthru
    _
  // Predicated region
  $region90: #{mega_graphsage_mlp_forward.1} parent=0 // pred_check
    _
  $region91: #{mega_graphsage_mlp_forward.1} parent=0 // pred_check_branch
    %75 = sbr.rel (0) target = $region93
  $region92: #{mega_graphsage_mlp_forward.1} parent=0 // pred_region
    _
  $region93: #{mega_graphsage_mlp_forward.1} parent=0 // pred_fallthru
    _
  %v77 = vld [vmem:[%s0] sm:$0xff]
  %v78 = vld [vmem:[%s0 + $0x8] sm:$0xff]
  %v79 = vld [vmem:[%s0 + $0x10] sm:$0xff]
  %v80 = vld [vmem:[%s0 + $0x18] sm:$0xff]
  %v81 = vld [vmem:[%s0 + $0x20] sm:$0xff]
  %v82 = vld [vmem:[%s0 + $0x28] sm:$0xff]
  %v83 = vld [vmem:[%s0 + $0x30] sm:$0xff]
  %v84 = vld [vmem:[%s0 + $0x38] sm:$0xff]
  %v85 = vld [vmem:[%s2] sm:$0x7]
  %v86 = vpack.c.bf16 %v78, %v77
  %v87 = vpack.c.bf16 %v80, %v79
  %v88 = vpack.c.bf16 %v82, %v81
  %v89 = vpack.c.bf16 %v84, %v83
  %v90 = vpack.c.bf16 %v85, %v85
  %v91 = vld [vmem:[%s3] sm:$0x1]
  %v93 = vlaneseq
  %v94 = vshrl.u32 %v93, 7
  %v95 = vsub.s32 0, %v94
  %v96 = vrot.slane %v91, %v95
  %vm98 = vcmask 23552
  %v100 = vsel %vm98, %v86, 0
  %v103 = vsel %vm98, %v87, 0
  %v106 = vsel %vm98, %v88, 0
  %v109 = vsel %vm98, %v89, 0
  %vm111 = vcmask 1040384
  %vm112 = vcmask 1041408
  %v113 = vsel %vm111, 4294967295, 65535
  %v114 = vsel %vm112, %v113, 0
  %v116 = vand.u32 %v90, %v114
  %118 = vmatprep.subr.bf16.mxu0 0
  %119 = vmatpush1.bf16.msra.mxu0 0
  %120 = vmatprep.subr.bf16.mxu0 0
  %121 = vmatpush1.bf16.msra.mxu0 0
  %122 = vmatprep.subr.bf16.mxu0 0
  %123 = vmatpush1.bf16.msra.mxu0 0
  %124 = vmatprep.subr.bf16.mxu0 0
  %125 = vmatpush1.bf16.msra.mxu0 0
  %126 = vmatprep.subr.bf16.mxu0 0
  %127 = vmatpush1.bf16.msra.mxu0 0
  %128 = vmatprep.subr.bf16.mxu0 0
  %129 = vmatpush1.bf16.msra.mxu0 0
  %130 = vmatprep.subr.bf16.mxu0 0
  %131 = vmatpush1.bf16.msra.mxu0 0
  %132 = vmatprep.subr.bf16.mxu0 0
  %133 = vmatpush1.bf16.msra.mxu0 %v116
  %134 = vmatprep.subr.bf16.mxu0 0
  %135 = vmatpush2.bf16.msra.mxu0 0
  %136 = vmatprep.subr.bf16.mxu0 0
  %137 = vmatpush2.bf16.msra.mxu0 0
  %138 = vmatprep.subr.bf16.mxu0 0
  %139 = vmatpush2.bf16.msra.mxu0 0
  %140 = vmatprep.subr.bf16.mxu0 0
  %141 = vmatpush2.bf16.msra.mxu0 0
  %142 = vmatprep.subr.bf16.mxu0 0
  %143 = vmatpush2.bf16.msra.mxu0 0
  %144 = vmatprep.subr.bf16.mxu0 0
  %145 = vmatpush2.bf16.msra.mxu0 0
  %146 = vmatprep.subr.bf16.mxu0 0
  %147 = vmatpush2.bf16.msra.mxu0 0
  %148 = vmatprep.subr.bf16.mxu0 0
  %149 = vmatpush2.bf16.msra.mxu0 0
  %150 = vmatprep.mubr.bf16.mxu0 0
  %151 = vmatmul.mubr.bf16.gmra.mxu0 %v100
  %v152 = vpop.f32.mrf.mxu0
  %v153 = vadd.f32 %v96, %v152
  %v154 = vpop.f32.mrf.mxu0
  %v155 = vpop.f32.mrf.mxu0
  %v156 = vadd.f32 %v96, %v155
  %v157 = vpop.f32.mrf.mxu0
  %158 = vmatprep.mubr.bf16.mxu0 0
  %159 = vmatmul.mubr.bf16.gmra.mxu0 %v103
  %v160 = vpop.f32.mrf.mxu0
  %v161 = vadd.f32 %v96, %v160
  %v162 = vpop.f32.mrf.mxu0
  %v163 = vpop.f32.mrf.mxu0
  %v164 = vadd.f32 %v96, %v163
  %v165 = vpop.f32.mrf.mxu0
  %166 = vmatprep.mubr.bf16.mxu0 0
  %167 = vmatmul.mubr.bf16.gmra.mxu0 %v106
  %v168 = vpop.f32.mrf.mxu0
  %v169 = vadd.f32 %v96, %v168
  %v170 = vpop.f32.mrf.mxu0
  %v171 = vpop.f32.mrf.mxu0
  %v172 = vadd.f32 %v96, %v171
  %v173 = vpop.f32.mrf.mxu0
  %174 = vmatprep.mubr.bf16.mxu0 0
  %175 = vmatmul.mubr.bf16.gmra.mxu0 %v109
  %v176 = vpop.f32.mrf.mxu0
  %v177 = vadd.f32 %v96, %v176
  %v178 = vpop.f32.mrf.mxu0
  %v179 = vpop.f32.mrf.mxu0
  %v180 = vadd.f32 %v96, %v179
  %v181 = vpop.f32.mrf.mxu0
  %182 = vdwg.mxu0
  %v183 = vmax.f32 %v153, 0.0
  %v184 = vmax.f32 %v156, 0.0
  %v185 = vmax.f32 %v161, 0.0
  %v186 = vmax.f32 %v164, 0.0
  %v187 = vmax.f32 %v169, 0.0
  %v188 = vmax.f32 %v172, 0.0
  %v189 = vmax.f32 %v177, 0.0
  %v190 = vmax.f32 %v180, 0.0
  %v191 = vld [vmem:[%s1] sm:$0xff]
  %v192 = vpack.c.bf16 %v191, %v191
  %v193 = vpack.c.bf16 %v184, %v183
  %v194 = vpack.c.bf16 %v186, %v185
  %v195 = vpack.c.bf16 %v188, %v187
  %v196 = vpack.c.bf16 %v190, %v189
  %vm197 = vcmask 523264
  %v199 = vsel %vm197, %v192, 0
  %201 = vmatprep.subr.bf16.mxu0 0
  %202 = vmatpush1.bf16.msra.mxu0 0
  %203 = vmatprep.subr.bf16.mxu0 0
  %204 = vmatpush1.bf16.msra.mxu0 0
  %205 = vmatprep.subr.bf16.mxu0 0
  %206 = vmatpush1.bf16.msra.mxu0 0
  %207 = vmatprep.subr.bf16.mxu0 0
  %208 = vmatpush1.bf16.msra.mxu0 0
  %209 = vmatprep.subr.bf16.mxu0 0
  %210 = vmatpush1.bf16.msra.mxu0 %v196
  %211 = vmatprep.subr.bf16.mxu0 0
  %212 = vmatpush1.bf16.msra.mxu0 %v195
  %213 = vmatprep.subr.bf16.mxu0 0
  %214 = vmatpush1.bf16.msra.mxu0 %v194
  %215 = vmatprep.subr.bf16.mxu0 0
  %216 = vmatpush1.bf16.msra.mxu0 %v193
  %217 = vmatprep.subr.bf16.mxu0 0
  %218 = vmatpush2.bf16.msra.mxu0 0
  %219 = vmatprep.subr.bf16.mxu0 0
  %220 = vmatpush2.bf16.msra.mxu0 0
  %221 = vmatprep.subr.bf16.mxu0 0
  %222 = vmatpush2.bf16.msra.mxu0 0
  %223 = vmatprep.subr.bf16.mxu0 0
  %224 = vmatpush2.bf16.msra.mxu0 0
  %225 = vmatprep.subr.bf16.mxu0 0
  %226 = vmatpush2.bf16.msra.mxu0 0
  %227 = vmatprep.subr.bf16.mxu0 0
  %228 = vmatpush2.bf16.msra.mxu0 0
  %229 = vmatprep.subr.bf16.mxu0 0
  %230 = vmatpush2.bf16.msra.mxu0 0
  %231 = vmatprep.subr.bf16.mxu0 0
  %232 = vmatpush2.bf16.msra.mxu0 0
  %233 = vmatprep.mubr.bf16.mxu0 0
  %234 = vmatmul.mubr.bf16.gmra.mxu0 %v199
  %v235 = vpop.f32.mrf.mxu0
  %v236 = vadd.f32 0.0, %v235
  %v237 = vpop.f32.mrf.mxu0
  %v238 = vpop.f32.mrf.mxu0
  %v239 = vpop.f32.mrf.mxu0
  %240 = vdwg.mxu0
  %v241 = vsel %vm197, %v191, 0.0
  %242 = vadd.xlane.f32.xlu0 %v241
  %v243 = vpop.xlane.xlu0 %242
  %v244 = vmax.f32 %v243, 1.0
  %v245 = vrcp.pop %v244
  %v246 = vmul.f32 %v236, %v245
  %v247 = vld [vmem:[%s4] sm:$0xff]
  %v248 = vld [vmem:[%s4 + $0x8] sm:$0xff]
  %v249 = vld [vmem:[%s4 + $0x10] sm:$0xff]
  %v250 = vld [vmem:[%s4 + $0x18] sm:$0xff]
  %v251 = vpack.c.bf16 %v246, %v246
  %v252 = vpack.c.bf16 %v248, %v247
  %v253 = vpack.c.bf16 %v250, %v249
  %v254 = vld [vmem:[%s5] sm:$0x1]
  %v256 = vlaneseq
  %v257 = vshrl.u32 %v256, 7
  %v258 = vsub.s32 0, %v257
  %v259 = vrot.slane %v254, %v258
  %vm261 = vcmask 261120
  %v263 = vsel %vm261, %v251, 0
  %265 = vmatprep.subr.bf16.mxu0 0
  %266 = vmatpush1.bf16.msra.mxu0 0
  %267 = vmatprep.subr.bf16.mxu0 0
  %268 = vmatpush1.bf16.msra.mxu0 0
  %269 = vmatprep.subr.bf16.mxu0 0
  %270 = vmatpush1.bf16.msra.mxu0 0
  %271 = vmatprep.subr.bf16.mxu0 0
  %272 = vmatpush1.bf16.msra.mxu0 0
  %273 = vmatprep.subr.bf16.mxu0 0
  %274 = vmatpush1.bf16.msra.mxu0 0
  %275 = vmatprep.subr.bf16.mxu0 0
  %276 = vmatpush1.bf16.msra.mxu0 0
  %277 = vmatprep.subr.bf16.mxu0 0
  %278 = vmatpush1.bf16.msra.mxu0 %v253
  %279 = vmatprep.subr.bf16.mxu0 0
  %280 = vmatpush1.bf16.msra.mxu0 %v252
  %281 = vmatprep.subr.bf16.mxu0 0
  %282 = vmatpush2.bf16.msra.mxu0 0
  %283 = vmatprep.subr.bf16.mxu0 0
  %284 = vmatpush2.bf16.msra.mxu0 0
  %285 = vmatprep.subr.bf16.mxu0 0
  %286 = vmatpush2.bf16.msra.mxu0 0
  %287 = vmatprep.subr.bf16.mxu0 0
  %288 = vmatpush2.bf16.msra.mxu0 0
  %289 = vmatprep.subr.bf16.mxu0 0
  %290 = vmatpush2.bf16.msra.mxu0 0
  %291 = vmatprep.subr.bf16.mxu0 0
  %292 = vmatpush2.bf16.msra.mxu0 0
  %293 = vmatprep.subr.bf16.mxu0 0
  %294 = vmatpush2.bf16.msra.mxu0 0
  %295 = vmatprep.subr.bf16.mxu0 0
  %296 = vmatpush2.bf16.msra.mxu0 0
  %297 = vmatprep.mubr.bf16.mxu0 0
  %298 = vmatmul.mubr.bf16.gmra.mxu0 %v263
  %v299 = vpop.f32.mrf.mxu0
  %v300 = vadd.f32 %v259, %v299
  %v301 = vpop.f32.mrf.mxu0
  %v302 = vpop.f32.mrf.mxu0
  %v303 = vpop.f32.mrf.mxu0
  %304 = vdwg.mxu0
  %v305 = vld [vmem:[%s6] sm:$0xff]
  %v306 = vld [vmem:[%s6 + $0x8] sm:$0xff]
  %v307 = vld [vmem:[%s6 + $0x10] sm:$0xff]
  %v308 = vld [vmem:[%s6 + $0x18] sm:$0xff]
  %v309 = vld [vmem:[%s7] sm:$0xff]
  %v310 = vld [vmem:[%s7 + $0x8] sm:$0xff]
  %v311 = vld [vmem:[%s7 + $0x10] sm:$0xff]
  %v312 = vld [vmem:[%s7 + $0x18] sm:$0xff]
  %v313 = vpack.c.bf16 %v310, %v309
  %v314 = vpack.c.bf16 %v312, %v311
  %v315 = vpack.c.bf16 %v306, %v305
  %v316 = vpack.c.bf16 %v308, %v307
  %v318 = vsel %vm261, %v313, 0
  %v321 = vsel %vm261, %v314, 0
  %323 = vmatprep.subr.bf16.mxu0 0
  %324 = vmatpush1.bf16.msra.mxu0 0
  %325 = vmatprep.subr.bf16.mxu0 0
  %326 = vmatpush1.bf16.msra.mxu0 0
  %327 = vmatprep.subr.bf16.mxu0 0
  %328 = vmatpush1.bf16.msra.mxu0 0
  %329 = vmatprep.subr.bf16.mxu0 0
  %330 = vmatpush1.bf16.msra.mxu0 0
  %331 = vmatprep.subr.bf16.mxu0 0
  %332 = vmatpush1.bf16.msra.mxu0 0
  %333 = vmatprep.subr.bf16.mxu0 0
  %334 = vmatpush1.bf16.msra.mxu0 0
  %335 = vmatprep.subr.bf16.mxu0 0
  %336 = vmatpush1.bf16.msra.mxu0 %v316
  %337 = vmatprep.subr.bf16.mxu0 0
  %338 = vmatpush1.bf16.msra.mxu0 %v315
  %339 = vmatprep.subr.bf16.mxu0 0
  %340 = vmatpush2.bf16.msra.mxu0 0
  %341 = vmatprep.subr.bf16.mxu0 0
  %342 = vmatpush2.bf16.msra.mxu0 0
  %343 = vmatprep.subr.bf16.mxu0 0
  %344 = vmatpush2.bf16.msra.mxu0 0
  %345 = vmatprep.subr.bf16.mxu0 0
  %346 = vmatpush2.bf16.msra.mxu0 0
  %347 = vmatprep.subr.bf16.mxu0 0
  %348 = vmatpush2.bf16.msra.mxu0 0
  %349 = vmatprep.subr.bf16.mxu0 0
  %350 = vmatpush2.bf16.msra.mxu0 0
  %351 = vmatprep.subr.bf16.mxu0 0
  %352 = vmatpush2.bf16.msra.mxu0 0
  %353 = vmatprep.subr.bf16.mxu0 0
  %354 = vmatpush2.bf16.msra.mxu0 0
  %355 = vmatprep.mubr.bf16.mxu0 0
  %356 = vmatmul.mubr.bf16.gmra.mxu0 %v318
  %v357 = vpop.f32.mrf.mxu0
  %v358 = vadd.f32 0.0, %v357
  %v359 = vpop.f32.mrf.mxu0
  %v360 = vpop.f32.mrf.mxu0
  %v361 = vadd.f32 0.0, %v360
  %v362 = vpop.f32.mrf.mxu0
  %363 = vmatprep.mubr.bf16.mxu0 0
  %364 = vmatmul.mubr.bf16.gmra.mxu0 %v321
  %v365 = vpop.f32.mrf.mxu0
  %v366 = vadd.f32 0.0, %v365
  %v367 = vpop.f32.mrf.mxu0
  %v368 = vpop.f32.mrf.mxu0
  %v369 = vadd.f32 0.0, %v368
  %v370 = vpop.f32.mrf.mxu0
  %371 = vdwg.mxu0
  %376 = vrot.lane.b32.xlu0 %v358, 16
  %v377 = vpop.permute.xlu0 %376
  %378 = vrot.lane.b32.xlu0 %v361, 16
  %v379 = vpop.permute.xlu0 %378
  %380 = vrot.lane.b32.xlu0 %v366, 16
  %v381 = vpop.permute.xlu0 %380
  %382 = vrot.lane.b32.xlu0 %v369, 16
  %v383 = vpop.permute.xlu0 %382
  %vm388 = vcmask 130048
  %v389 = vsel %vm388, %v305, %v377
  %v390 = vsel %vm388, %v306, %v379
  %v391 = vsel %vm388, %v307, %v381
  %v392 = vsel %vm388, %v308, %v383
  %v393 = vld [vmem:[%s8] sm:$0xff]
  %v394 = vld [vmem:[%s8 + $0x8] sm:$0xff]
  %v395 = vld [vmem:[%s8 + $0x10] sm:$0xff]
  %v396 = vld [vmem:[%s8 + $0x18] sm:$0xff]
  %v397 = vpack.c.bf16 %v390, %v389
  %v398 = vpack.c.bf16 %v392, %v391
  %v399 = vpack.c.bf16 %v394, %v393
  %v400 = vpack.c.bf16 %v396, %v395
  %v401 = vld [vmem:[%s9] sm:$0x1]
  %v403 = vlaneseq
  %v404 = vshrl.u32 %v403, 7
  %v405 = vsub.s32 0, %v404
  %v406 = vrot.slane %v401, %v405
  %v409 = vsel %vm261, %v397, 0
  %v412 = vsel %vm261, %v398, 0
  %414 = vmatprep.subr.bf16.mxu0 0
  %415 = vmatpush1.bf16.msra.mxu0 0
  %416 = vmatprep.subr.bf16.mxu0 0
  %417 = vmatpush1.bf16.msra.mxu0 0
  %418 = vmatprep.subr.bf16.mxu0 0
  %419 = vmatpush1.bf16.msra.mxu0 0
  %420 = vmatprep.subr.bf16.mxu0 0
  %421 = vmatpush1.bf16.msra.mxu0 0
  %422 = vmatprep.subr.bf16.mxu0 0
  %423 = vmatpush1.bf16.msra.mxu0 0
  %424 = vmatprep.subr.bf16.mxu0 0
  %425 = vmatpush1.bf16.msra.mxu0 0
  %426 = vmatprep.subr.bf16.mxu0 0
  %427 = vmatpush1.bf16.msra.mxu0 %v400
  %428 = vmatprep.subr.bf16.mxu0 0
  %429 = vmatpush1.bf16.msra.mxu0 %v399
  %430 = vmatprep.subr.bf16.mxu0 0
  %431 = vmatpush2.bf16.msra.mxu0 0
  %432 = vmatprep.subr.bf16.mxu0 0
  %433 = vmatpush2.bf16.msra.mxu0 0
  %434 = vmatprep.subr.bf16.mxu0 0
  %435 = vmatpush2.bf16.msra.mxu0 0
  %436 = vmatprep.subr.bf16.mxu0 0
  %437 = vmatpush2.bf16.msra.mxu0 0
  %438 = vmatprep.subr.bf16.mxu0 0
  %439 = vmatpush2.bf16.msra.mxu0 0
  %440 = vmatprep.subr.bf16.mxu0 0
  %441 = vmatpush2.bf16.msra.mxu0 0
  %442 = vmatprep.subr.bf16.mxu0 0
  %443 = vmatpush2.bf16.msra.mxu0 0
  %444 = vmatprep.subr.bf16.mxu0 0
  %445 = vmatpush2.bf16.msra.mxu0 0
  %446 = vmatprep.mubr.bf16.mxu0 0
  %447 = vmatmul.mubr.bf16.gmra.mxu0 %v409
  %v448 = vpop.f32.mrf.mxu0
  %v449 = vadd.f32 %v406, %v448
  %v450 = vpop.f32.mrf.mxu0
  %v451 = vpop.f32.mrf.mxu0
  %v452 = vadd.f32 %v406, %v451
  %v453 = vpop.f32.mrf.mxu0
  %454 = vmatprep.mubr.bf16.mxu0 0
  %455 = vmatmul.mubr.bf16.gmra.mxu0 %v412
  %v456 = vpop.f32.mrf.mxu0
  %v457 = vadd.f32 %v406, %v456
  %v458 = vpop.f32.mrf.mxu0
  %v459 = vpop.f32.mrf.mxu0
  %v460 = vadd.f32 %v406, %v459
  %v461 = vpop.f32.mrf.mxu0
  %462 = vdwg.mxu0
  %v463 = vmax.f32 %v449, 0.0
  %v464 = vmax.f32 %v452, 0.0
  %v465 = vmax.f32 %v457, 0.0
  %v466 = vmax.f32 %v460, 0.0
  %v467 = vpack.c.bf16 %v464, %v463
  %v468 = vpack.c.bf16 %v466, %v465
  %469 = vmatprep.subr.bf16.mxu0 0
  %470 = vmatpush1.bf16.msra.mxu0 0
  %471 = vmatprep.subr.bf16.mxu0 0
  %472 = vmatpush1.bf16.msra.mxu0 0
  %473 = vmatprep.subr.bf16.mxu0 0
  %474 = vmatpush1.bf16.msra.mxu0 0
  %475 = vmatprep.subr.bf16.mxu0 0
  %476 = vmatpush1.bf16.msra.mxu0 0
  %477 = vmatprep.subr.bf16.mxu0 0
  %478 = vmatpush1.bf16.msra.mxu0 0
  %479 = vmatprep.subr.bf16.mxu0 0
  %480 = vmatpush1.bf16.msra.mxu0 0
  %481 = vmatprep.subr.bf16.mxu0 0
  %482 = vmatpush1.bf16.msra.mxu0 %v468
  %483 = vmatprep.subr.bf16.mxu0 0
  %484 = vmatpush1.bf16.msra.mxu0 %v467
  %485 = vmatprep.subr.bf16.mxu0 0
  %486 = vmatpush2.bf16.msra.mxu0 0
  %487 = vmatprep.subr.bf16.mxu0 0
  %488 = vmatpush2.bf16.msra.mxu0 0
  %489 = vmatprep.subr.bf16.mxu0 0
  %490 = vmatpush2.bf16.msra.mxu0 0
  %491 = vmatprep.subr.bf16.mxu0 0
  %492 = vmatpush2.bf16.msra.mxu0 0
  %493 = vmatprep.subr.bf16.mxu0 0
  %494 = vmatpush2.bf16.msra.mxu0 0
  %495 = vmatprep.subr.bf16.mxu0 0
  %496 = vmatpush2.bf16.msra.mxu0 0
  %497 = vmatprep.subr.bf16.mxu0 0
  %498 = vmatpush2.bf16.msra.mxu0 0
  %499 = vmatprep.subr.bf16.mxu0 0
  %500 = vmatpush2.bf16.msra.mxu0 0
  %501 = vmatprep.mubr.bf16.mxu0 0
  %502 = vmatmul.mubr.bf16.gmra.mxu0 %v318
  %v503 = vpop.f32.mrf.mxu0
  %v504 = vadd.f32 0.0, %v503
  %v505 = vpop.f32.mrf.mxu0
  %v506 = vpop.f32.mrf.mxu0
  %v507 = vadd.f32 0.0, %v506
  %v508 = vpop.f32.mrf.mxu0
  %509 = vmatprep.mubr.bf16.mxu0 0
  %510 = vmatmul.mubr.bf16.gmra.mxu0 %v321
  %v511 = vpop.f32.mrf.mxu0
  %v512 = vadd.f32 0.0, %v511
  %v513 = vpop.f32.mrf.mxu0
  %v514 = vpop.f32.mrf.mxu0
  %v515 = vadd.f32 0.0, %v514
  %v516 = vpop.f32.mrf.mxu0
  %517 = vdwg.mxu0
  %522 = vrot.lane.b32.xlu0 %v504, 32
  %v523 = vpop.permute.xlu0 %522
  %524 = vrot.lane.b32.xlu0 %v507, 32
  %v525 = vpop.permute.xlu0 %524
  %526 = vrot.lane.b32.xlu0 %v512, 32
  %v527 = vpop.permute.xlu0 %526
  %528 = vrot.lane.b32.xlu0 %v515, 32
  %v529 = vpop.permute.xlu0 %528
  %v534 = vsel %vm261, %v463, %v523
  %v535 = vsel %vm261, %v464, %v525
  %v536 = vsel %vm261, %v465, %v527
  %v537 = vsel %vm261, %v466, %v529
  %v538 = vld [vmem:[%s10] sm:$0xff]
  %v539 = vld [vmem:[%s10 + $0x8] sm:$0xff]
  %v540 = vld [vmem:[%s10 + $0x10] sm:$0xff]
  %v541 = vld [vmem:[%s10 + $0x18] sm:$0xff]
  %v542 = vld [vmem:[%s10 + $0x20] sm:$0xff]
  %v543 = vld [vmem:[%s10 + $0x28] sm:$0xff]
  %v544 = vld [vmem:[%s10 + $0x30] sm:$0xff]
  %v545 = vld [vmem:[%s10 + $0x38] sm:$0xff]
  %v546 = vpack.c.bf16 %v535, %v534
  %v547 = vpack.c.bf16 %v537, %v536
  %v548 = vpack.c.bf16 %v539, %v538
  %v549 = vpack.c.bf16 %v541, %v540
  %v550 = vpack.c.bf16 %v543, %v542
  %v551 = vpack.c.bf16 %v545, %v544
  %v552 = vld [vmem:[#allocation2] sm:$0x1]
  %v554 = vlaneseq
  %v555 = vshrl.u32 %v554, 7
  %v556 = vsub.s32 0, %v555
  %v557 = vrot.slane %v552, %v556
  %v560 = vsel %vm197, %v546, 0
  %v563 = vsel %vm197, %v547, 0
  %565 = vmatprep.subr.bf16.mxu0 0
  %566 = vmatpush1.bf16.msra.mxu0 0
  %567 = vmatprep.subr.bf16.mxu0 0
  %568 = vmatpush1.bf16.msra.mxu0 0
  %569 = vmatprep.subr.bf16.mxu0 0
  %570 = vmatpush1.bf16.msra.mxu0 0
  %571 = vmatprep.subr.bf16.mxu0 0
  %572 = vmatpush1.bf16.msra.mxu0 0
  %573 = vmatprep.subr.bf16.mxu0 0
  %574 = vmatpush1.bf16.msra.mxu0 %v551
  %575 = vmatprep.subr.bf16.mxu0 0
  %576 = vmatpush1.bf16.msra.mxu0 %v550
  %577 = vmatprep.subr.bf16.mxu0 0
  %578 = vmatpush1.bf16.msra.mxu0 %v549
  %579 = vmatprep.subr.bf16.mxu0 0
  %580 = vmatpush1.bf16.msra.mxu0 %v548
  %581 = vmatprep.subr.bf16.mxu0 0
  %582 = vmatpush2.bf16.msra.mxu0 0
  %583 = vmatprep.subr.bf16.mxu0 0
  %584 = vmatpush2.bf16.msra.mxu0 0
  %585 = vmatprep.subr.bf16.mxu0 0
  %586 = vmatpush2.bf16.msra.mxu0 0
  %587 = vmatprep.subr.bf16.mxu0 0
  %588 = vmatpush2.bf16.msra.mxu0 0
  %589 = vmatprep.subr.bf16.mxu0 0
  %590 = vmatpush2.bf16.msra.mxu0 0
  %591 = vmatprep.subr.bf16.mxu0 0
  %592 = vmatpush2.bf16.msra.mxu0 0
  %593 = vmatprep.subr.bf16.mxu0 0
  %594 = vmatpush2.bf16.msra.mxu0 0
  %595 = vmatprep.subr.bf16.mxu0 0
  %596 = vmatpush2.bf16.msra.mxu0 0
  %597 = vmatprep.mubr.bf16.mxu0 0
  %598 = vmatmul.mubr.bf16.gmra.mxu0 %v560
  %v599 = vpop.f32.mrf.mxu0
  %v600 = vadd.f32 %v557, %v599
  %v601 = vpop.f32.mrf.mxu0
  %v602 = vpop.f32.mrf.mxu0
  %v603 = vpop.f32.mrf.mxu0
  %604 = vmatprep.mubr.bf16.mxu0 0
  %605 = vmatmul.mubr.bf16.gmra.mxu0 %v563
  %v606 = vpop.f32.mrf.mxu0
  %v607 = vpop.f32.mrf.mxu0
  %v608 = vpop.f32.mrf.mxu0
  %v609 = vpop.f32.mrf.mxu0
  %610 = vdwg.mxu0
  %v611 = vld [vmem:[%s13] sm:$0x1]
  %613 = vset.pattern.permute.xlu0 0
  %614 = vperm.xlu0 %613, %v600
  %v615 = vpop.permute.xlu0 %614
  %v618 = vlaneseq
  %v619 = vshrl.u32 %v618, 7
  %v620 = vsub.s32 0, %v619
  %v621 = vrot.slane %v611, %v620
  %v623 = vmul.f32 %v615, %v621
  %v624 = vld [vmem:[%s12] sm:$0xff]
  %v625 = vld [vmem:[%s12 + $0x8] sm:$0xff]
  %v626 = vld [vmem:[%s12 + $0x10] sm:$0xff]
  %v627 = vld [vmem:[%s12 + $0x18] sm:$0xff]
  %v628 = vld [vmem:[%s12 + $0x20] sm:$0xff]
  %v629 = vld [vmem:[%s12 + $0x28] sm:$0xff]
  %v630 = vld [vmem:[%s12 + $0x30] sm:$0xff]
  %v631 = vld [vmem:[%s12 + $0x38] sm:$0x7f]
  %v632 = vpack.c.bf16 %v300, %v300
  %v633 = vpack.c.bf16 %v625, %v624
  %v634 = vpack.c.bf16 %v627, %v626
  %v635 = vpack.c.bf16 %v629, %v628
  %v636 = vpack.c.bf16 %v631, %v630
  %vm637 = vcmask 515072
  %v639 = vsel %vm637, %v632, 0
  %vm641 = vcmask 1046528
  %vm642 = vcmask 1047552
  %v643 = vsel %vm641, 4294967295, 65535
  %v644 = vsel %vm642, %v643, 0
  %v646 = vand.u32 %v636, %v644
  %648 = vmatprep.subr.bf16.mxu0 0
  %649 = vmatpush1.bf16.msra.mxu0 0
  %650 = vmatprep.subr.bf16.mxu0 0
  %651 = vmatpush1.bf16.msra.mxu0 0
  %652 = vmatprep.subr.bf16.mxu0 0
  %653 = vmatpush1.bf16.msra.mxu0 0
  %654 = vmatprep.subr.bf16.mxu0 0
  %655 = vmatpush1.bf16.msra.mxu0 0
  %656 = vmatprep.subr.bf16.mxu0 0
  %657 = vmatpush1.bf16.msra.mxu0 %v646
  %658 = vmatprep.subr.bf16.mxu0 0
  %659 = vmatpush1.bf16.msra.mxu0 %v635
  %660 = vmatprep.subr.bf16.mxu0 0
  %661 = vmatpush1.bf16.msra.mxu0 %v634
  %662 = vmatprep.subr.bf16.mxu0 0
  %663 = vmatpush1.bf16.msra.mxu0 %v633
  %664 = vmatprep.subr.bf16.mxu0 0
  %665 = vmatpush2.bf16.msra.mxu0 0
  %666 = vmatprep.subr.bf16.mxu0 0
  %667 = vmatpush2.bf16.msra.mxu0 0
  %668 = vmatprep.subr.bf16.mxu0 0
  %669 = vmatpush2.bf16.msra.mxu0 0
  %670 = vmatprep.subr.bf16.mxu0 0
  %671 = vmatpush2.bf16.msra.mxu0 0
  %672 = vmatprep.subr.bf16.mxu0 0
  %673 = vmatpush2.bf16.msra.mxu0 0
  %674 = vmatprep.subr.bf16.mxu0 0
  %675 = vmatpush2.bf16.msra.mxu0 0
  %676 = vmatprep.subr.bf16.mxu0 0
  %677 = vmatpush2.bf16.msra.mxu0 0
  %678 = vmatprep.subr.bf16.mxu0 0
  %679 = vmatpush2.bf16.msra.mxu0 0
  %680 = vmatprep.mubr.bf16.mxu0 0
  %681 = vmatmul.mubr.bf16.gmra.mxu0 %v639
  %v682 = vpop.f32.mrf.mxu0
  %v683 = vadd.f32 %v623, %v682
  %v684 = vpop.f32.mrf.mxu0
  %v685 = vpop.f32.mrf.mxu0
  %v686 = vpop.f32.mrf.mxu0
  %687 = vdwg.mxu0
  %v688 = vld [vmem:[%s14] sm:$0x1]
  %v690 = vlaneseq
  %v691 = vshrl.u32 %v690, 7
  %v692 = vsub.s32 0, %v691
  %v693 = vrot.slane %v688, %v692
  %v695 = vadd.f32 %v683, %v693
  %v696 = vld [vmem:[%s15] sm:$0x1]
  %v697 = vld [vmem:[%s16] sm:$0x1]
  %v698 = vrot.slane %v695, 4
  %v699 = vadd.f32 %v695, %v698
  %v700 = vrot.slane %v699, 2
  %v701 = vadd.f32 %v699, %v700
  %v702 = vrot.slane %v701, 1
  %v703 = vadd.f32 %v701, %v702
  %v704 = vrcp.pop 8.0
  %v705 = vmul.f32 %v703, %v704
  %v706 = vsub.f32 %v695, %v705
  %v707 = vmul.f32 %v706, %v706
  %v708 = vrot.slane %v707, 4
  %v709 = vadd.f32 %v707, %v708
  %v710 = vrot.slane %v709, 2
  %v711 = vadd.f32 %v709, %v710
  %v712 = vrot.slane %v711, 1
  %v713 = vadd.f32 %v711, %v712
  %v714 = vmul.f32 %v713, %v704
  %v715 = vadd.f32 %v714, 1e-05
  %v716 = vrsqrt.pop %v715
  %v717 = vmul.f32 %v706, %v716
  %v719 = vlaneseq
  %v720 = vshrl.u32 %v719, 7
  %v721 = vsub.s32 0, %v720
  %v722 = vrot.slane %v696, %v721
  %v724 = vmul.f32 %v717, %v722
  %v726 = vlaneseq
  %v727 = vshrl.u32 %v726, 7
  %v728 = vsub.s32 0, %v727
  %v729 = vrot.slane %v697, %v728
  %v731 = vadd.f32 %v724, %v729
  %v732 = vmax.f32 %v731, 0.0
  %v733 = vld [vmem:[%s17] sm:$0xff]
  %v734 = vld [vmem:[%s17 + $0x8] sm:$0xff]
  %v735 = vld [vmem:[%s17 + $0x10] sm:$0xff]
  %v736 = vld [vmem:[%s17 + $0x18] sm:$0xff]
  %v737 = vld [vmem:[%s17 + $0x20] sm:$0xff]
  %v738 = vld [vmem:[%s17 + $0x28] sm:$0xff]
  %v739 = vld [vmem:[%s17 + $0x30] sm:$0xff]
  %v740 = vld [vmem:[%s17 + $0x38] sm:$0xff]
  %v741 = vld [vmem:[%s17 + $0x40] sm:$0xff]
  %v742 = vld [vmem:[%s17 + $0x48] sm:$0xff]
  %v743 = vld [vmem:[%s17 + $0x50] sm:$0xff]
  %v744 = vld [vmem:[%s17 + $0x58] sm:$0xff]
  %v745 = vld [vmem:[%s17 + $0x60] sm:$0xff]
  %v746 = vld [vmem:[%s17 + $0x68] sm:$0xff]
  %v747 = vld [vmem:[%s17 + $0x70] sm:$0xff]
  %v748 = vld [vmem:[%s17 + $0x78] sm:$0xff]
  %v749 = vpack.c.bf16 %v732, %v732
  %v750 = vpack.c.bf16 %v734, %v733
  %v751 = vpack.c.bf16 %v736, %v735
  %v752 = vpack.c.bf16 %v738, %v737
  %v753 = vpack.c.bf16 %v740, %v739
  %v754 = vpack.c.bf16 %v742, %v741
  %v755 = vpack.c.bf16 %v744, %v743
  %v756 = vpack.c.bf16 %v746, %v745
  %v757 = vpack.c.bf16 %v748, %v747
  %v758 = vld [vmem:[%s18] sm:$0x1]
  %v760 = vlaneseq
  %v761 = vshrl.u32 %v760, 7
  %v762 = vsub.s32 0, %v761
  %v763 = vrot.slane %v758, %v762
  %765 = vmatprep.subr.bf16.mxu0 0
  %766 = vmatpush1.bf16.msra.mxu0 %v757
  %767 = vmatprep.subr.bf16.mxu0 0
  %768 = vmatpush1.bf16.msra.mxu0 %v756
  %769 = vmatprep.subr.bf16.mxu0 0
  %770 = vmatpush1.bf16.msra.mxu0 %v755
  %771 = vmatprep.subr.bf16.mxu0 0
  %772 = vmatpush1.bf16.msra.mxu0 %v754
  %773 = vmatprep.subr.bf16.mxu0 0
  %774 = vmatpush1.bf16.msra.mxu0 %v753
  %775 = vmatprep.subr.bf16.mxu0 0
  %776 = vmatpush1.bf16.msra.mxu0 %v752
  %777 = vmatprep.subr.bf16.mxu0 0
  %778 = vmatpush1.bf16.msra.mxu0 %v751
  %779 = vmatprep.subr.bf16.mxu0 0
  %780 = vmatpush1.bf16.msra.mxu0 %v750
  %781 = vmatprep.subr.bf16.mxu0 0
  %782 = vmatpush2.bf16.msra.mxu0 0
  %783 = vmatprep.subr.bf16.mxu0 0
  %784 = vmatpush2.bf16.msra.mxu0 0
  %785 = vmatprep.subr.bf16.mxu0 0
  %786 = vmatpush2.bf16.msra.mxu0 0
  %787 = vmatprep.subr.bf16.mxu0 0
  %788 = vmatpush2.bf16.msra.mxu0 0
  %789 = vmatprep.subr.bf16.mxu0 0
  %790 = vmatpush2.bf16.msra.mxu0 0
  %791 = vmatprep.subr.bf16.mxu0 0
  %792 = vmatpush2.bf16.msra.mxu0 0
  %793 = vmatprep.subr.bf16.mxu0 0
  %794 = vmatpush2.bf16.msra.mxu0 0
  %795 = vmatprep.subr.bf16.mxu0 0
  %796 = vmatpush2.bf16.msra.mxu0 0
  %797 = vmatprep.mubr.bf16.mxu0 0
  %798 = vmatmul.mubr.bf16.gmra.mxu0 %v749
  %v799 = vpop.f32.mrf.mxu0
  %v800 = vadd.f32 %v763, %v799
  %v801 = vpop.f32.mrf.mxu0
  %v802 = vpop.f32.mrf.mxu0
  %v803 = vpop.f32.mrf.mxu0
  %804 = vdwg.mxu0
  %v805 = vld [vmem:[%s19] sm:$0x1]
  %v806 = vld [vmem:[%s20] sm:$0x1]
  %v807 = vsel %vm197, %v800, 0.0
  %v808 = vrot.slane %v807, 4
  %v809 = vadd.f32 %v807, %v808
  %v810 = vrot.slane %v809, 2
  %v811 = vadd.f32 %v809, %v810
  %v812 = vrot.slane %v811, 1
  %v813 = vadd.f32 %v811, %v812
  %v814 = vmul.f32 %v813, %v704
  %v815 = vsub.f32 %v800, %v814
  %v816 = vmul.f32 %v815, %v815
  %v817 = vsel %vm197, %v816, 0.0
  %v818 = vrot.slane %v817, 4
  %v819 = vadd.f32 %v817, %v818
  %v820 = vrot.slane %v819, 2
  %v821 = vadd.f32 %v819, %v820
  %v822 = vrot.slane %v821, 1
  %v823 = vadd.f32 %v821, %v822
  %v824 = vmul.f32 %v823, %v704
  %v825 = vadd.f32 %v824, 1e-05
  %v826 = vrsqrt.pop %v825
  %v827 = vmul.f32 %v815, %v826
  %v829 = vlaneseq
  %v830 = vshrl.u32 %v829, 7
  %v831 = vsub.s32 0, %v830
  %v832 = vrot.slane %v805, %v831
  %v834 = vmul.f32 %v827, %v832
  %v836 = vlaneseq
  %v837 = vshrl.u32 %v836, 7
  %v838 = vsub.s32 0, %v837
  %v839 = vrot.slane %v806, %v838
  %v841 = vadd.f32 %v834, %v839
  %v842 = vmax.f32 %v841, 0.0
  %v843 = vld [vmem:[%s21] sm:$0xff]
  %v844 = vld [vmem:[%s21 + $0x8] sm:$0xff]
  %v845 = vld [vmem:[%s21 + $0x10] sm:$0xff]
  %v846 = vld [vmem:[%s21 + $0x18] sm:$0xff]
  %v847 = vld [vmem:[%s21 + $0x20] sm:$0xff]
  %v848 = vld [vmem:[%s21 + $0x28] sm:$0xff]
  %v849 = vld [vmem:[%s21 + $0x30] sm:$0xff]
  %v850 = vld [vmem:[%s21 + $0x38] sm:$0xff]
  %v851 = vpack.c.bf16 %v842, %v842
  %v852 = vpack.c.bf16 %v844, %v843
  %v853 = vpack.c.bf16 %v846, %v845
  %v854 = vpack.c.bf16 %v848, %v847
  %v855 = vpack.c.bf16 %v850, %v849
  %v856 = vld [vmem:[%s22] sm:$0x1]
  %v858 = vlaneseq
  %v859 = vshrl.u32 %v858, 7
  %v860 = vsub.s32 0, %v859
  %v861 = vrot.slane %v856, %v860
  %v864 = vsel %vm197, %v851, 0
  %866 = vmatprep.subr.bf16.mxu0 0
  %867 = vmatpush1.bf16.msra.mxu0 0
  %868 = vmatprep.subr.bf16.mxu0 0
  %869 = vmatpush1.bf16.msra.mxu0 0
  %870 = vmatprep.subr.bf16.mxu0 0
  %871 = vmatpush1.bf16.msra.mxu0 0
  %872 = vmatprep.subr.bf16.mxu0 0
  %873 = vmatpush1.bf16.msra.mxu0 0
  %874 = vmatprep.subr.bf16.mxu0 0
  %875 = vmatpush1.bf16.msra.mxu0 %v855
  %876 = vmatprep.subr.bf16.mxu0 0
  %877 = vmatpush1.bf16.msra.mxu0 %v854
  %878 = vmatprep.subr.bf16.mxu0 0
  %879 = vmatpush1.bf16.msra.mxu0 %v853
  %880 = vmatprep.subr.bf16.mxu0 0
  %881 = vmatpush1.bf16.msra.mxu0 %v852
  %882 = vmatprep.subr.bf16.mxu0 0
  %883 = vmatpush2.bf16.msra.mxu0 0
  %884 = vmatprep.subr.bf16.mxu0 0
  %885 = vmatpush2.bf16.msra.mxu0 0
  %886 = vmatprep.subr.bf16.mxu0 0
  %887 = vmatpush2.bf16.msra.mxu0 0
  %888 = vmatprep.subr.bf16.mxu0 0
  %889 = vmatpush2.bf16.msra.mxu0 0
  %890 = vmatprep.subr.bf16.mxu0 0
  %891 = vmatpush2.bf16.msra.mxu0 0
  %892 = vmatprep.subr.bf16.mxu0 0
  %893 = vmatpush2.bf16.msra.mxu0 0
  %894 = vmatprep.subr.bf16.mxu0 0
  %895 = vmatpush2.bf16.msra.mxu0 0
  %896 = vmatprep.subr.bf16.mxu0 0
  %897 = vmatpush2.bf16.msra.mxu0 0
  %898 = vmatprep.mubr.bf16.mxu0 0
  %899 = vmatmul.mubr.bf16.gmra.mxu0 %v864
  %v900 = vpop.f32.mrf.mxu0
  %v901 = vadd.f32 %v861, %v900
  %v902 = vpop.f32.mrf.mxu0
  %v903 = vpop.f32.mrf.mxu0
  %v904 = vpop.f32.mrf.mxu0
  %905 = vdwg.mxu0
  %906 = vst [vmem:[%s23] sm:$0xff] %v901
  // Predicated region
  $region94: #{mega_graphsage_mlp_forward.1} parent=0 // pred_check
    _
  $region95: #{mega_graphsage_mlp_forward.1} parent=0 // pred_check_branch
    %908 = sbr.rel (0) target = $region97
  $region96: #{mega_graphsage_mlp_forward.1} parent=0 // pred_region
    _
  $region97: #{mega_graphsage_mlp_forward.1} parent=0 // pred_fallthru
    _
  // Predicated region
  $region98: #{mega_graphsage_mlp_forward.1} parent=0 // pred_check
    _
  $region99: #{mega_graphsage_mlp_forward.1} parent=0 // pred_check_branch
    %910 = sbr.rel (0) target = $region101
  $region100: #{mega_graphsage_mlp_forward.1} parent=0 // pred_region
    _
  $region101: #{mega_graphsage_mlp_forward.1} parent=0 // pred_fallthru
    _

</llo_original>
